<compile_context>
chip_gen: v6e
topology: v6e:2x2x1
jax: 0.10.0
libtpu: 0.0.40
codegen_flags: <defaults>
</compile_context>

<pallas_src>
import math
from functools import partial

import jax
import jax.numpy as jnp
from jax.experimental import pallas as pl
from jax.experimental.pallas import tpu as pltpu


def _softplus100(v):
    # torch.nn.functional.softplus(v, beta=100, threshold=20):
    #   (1/100) * log(1 + exp(100*v))  if 100*v <= 20 else v
    z = 100.0 * v
    return jnp.where(z > 20.0, v, jnp.log1p(jnp.exp(jnp.minimum(z, 20.0))) * (1.0 / 100.0))


def fwt_kernel(x_ref, g_ref, b_ref, o_ref):
    # x_ref: (tm, W) tile of the lane-packed input.
    # g_ref / b_ref: (1, W) precomputed per-feature gamma / beta (already
    #   replicated k times along the lane axis to match the packing).
    # Row-broadcast FMA on the VPU; purely HBM-bandwidth bound.
    o_ref[...] = g_ref[...] * x_ref[...] + b_ref[...]


@partial(jax.jit, static_argnames=("target_tile_bytes",))
def fwt_forward(x, gamma_param, beta_param, rnd_g, rnd_b, *, target_tile_bytes=2 * 1024 * 1024):
    """x: (B, N, D). gamma/beta params and rnd_*: (D,)."""
    B, N, D = x.shape
    rows = B * N
    dtype = x.dtype
    itemsize = jnp.dtype(dtype).itemsize

    # --- hoisted per-feature math (constant across all rows) -----------------
    g_vec = (1.0 + rnd_g.astype(jnp.float32) * _softplus100(gamma_param.astype(jnp.float32)))
    b_vec = (rnd_b.astype(jnp.float32) * _softplus100(beta_param.astype(jnp.float32)))
    g_vec = g_vec.astype(dtype)  # (D,)
    b_vec = b_vec.astype(dtype)  # (D,)

    # --- lane-dense packing: fold k rows into the lane axis ------------------
    k = 128 // math.gcd(D, 128)          # k*D == lcm(D,128), a multiple of 128
    W = k * D

    x2 = x.reshape(rows, D)
    packed_rows = pl.cdiv(rows, k)
    pad_rows = packed_rows * k - rows
    if pad_rows:
        x2 = jnp.pad(x2, ((0, pad_rows), (0, 0)))
    x2 = x2.reshape(packed_rows, W)      # contiguous reshape: no data movement

    g2 = jnp.tile(g_vec, (k,)).reshape(1, W)
    b2 = jnp.tile(b_vec, (k,)).reshape(1, W)

    # --- choose a large row tile (~target_tile_bytes per buffer) -------------
    tm = max(8, (target_tile_bytes // (W * itemsize)) // 8 * 8)
    if tm >= packed_rows:
        tm = packed_rows                 # single tile; block == full array dim is legal
        grid_m = 1
        padded_rows = packed_rows
    else:
        grid_m = pl.cdiv(packed_rows, tm)
        padded_rows = grid_m * tm
        if padded_rows != packed_rows:
            x2 = jnp.pad(x2, ((0, padded_rows - packed_rows), (0, 0)))

    out = pl.pallas_call(
        fwt_kernel,
        out_shape=jax.ShapeDtypeStruct((padded_rows, W), dtype),
        grid_spec=pltpu.PrefetchScalarGridSpec(
            num_scalar_prefetch=0,
            grid=(grid_m,),
            in_specs=[
                pl.BlockSpec((tm, W), lambda i: (i, 0)),   # streamed x tile
                pl.BlockSpec((1, W), lambda i: (0, 0)),    # resident gamma row
                pl.BlockSpec((1, W), lambda i: (0, 0)),    # resident beta row
            ],
            out_specs=pl.BlockSpec((tm, W), lambda i: (i, 0)),
        ),
        compiler_params=pltpu.CompilerParams(
            dimension_semantics=("parallel",),            # shards row tiles across TCs on v7x
            vmem_limit_bytes=32 * 1024 * 1024,            # 2 MiB tiles x double-buffer fits easily
        ),
    )(x2, g2, b2)

    # strip padding, undo lane packing
    out = out[:packed_rows].reshape(packed_rows * k, D)[:rows]
    return out.reshape(B, N, D)


if __name__ == "__main__":
    # Small shapes consistent with the module: x of shape (B, N, dim)
    B, N, dim = 2, 8, 32
    gamma_init, beta_init = 0.3, 0.5

    key = jax.random.PRNGKey(0)
    kx, kg, kb = jax.random.split(key, 3)

    x = jax.random.normal(kx, (B, N, dim), dtype=jnp.float32)

    # Parameters: torch.ones(1,1,dim) * gamma  /  * beta (deterministic init)
    gamma_param = jnp.full((dim,), gamma_init, dtype=jnp.float32)
    beta_param = jnp.full((dim,), beta_init, dtype=jnp.float32)

    # Per-forward random draws (torch.randn(1,1,dim)); generated in plain JAX glue.
    # TODO(synk): torch.randn inside forward is supplied from the wrapper; in-kernel
    # generation would use pltpu.prng_seed / pltpu.stateful_normal if required.
    rnd_g = jax.random.normal(kg, (dim,), dtype=jnp.float32)
    rnd_b = jax.random.normal(kb, (dim,), dtype=jnp.float32)

    out = fwt_forward(x, gamma_param, beta_param, rnd_g, rnd_b)
    out = jax.block_until_ready(out)

    # Reference check in plain JAX
    def softplus100(v):
        z = 100.0 * v
        return jnp.where(z > 20.0, v, jnp.log1p(jnp.exp(jnp.minimum(z, 20.0))) / 100.0)

    g_ref = 1.0 + rnd_g[None, None, :] * softplus100(gamma_param)[None, None, :]
    b_ref = rnd_b[None, None, :] * softplus100(beta_param)[None, None, :]
    ref = g_ref * x + b_ref

    assert out.shape == x.shape
    assert jnp.allclose(out, ref, atol=1e-5, rtol=1e-5), "mismatch vs reference"
    print("KERNEL_OK")
</pallas_src>

<mosaic_0001>
module attributes {stable_mosaic.version = 11 : i64} {
  func.func @fwt_kernel(%arg0: i32, %arg1: memref<4x128xf32, #tpu.memory_space<vmem>>, %arg2: memref<1x128xf32, #tpu.memory_space<vmem>>, %arg3: memref<1x128xf32, #tpu.memory_space<vmem>>, %arg4: memref<4x128xf32, #tpu.memory_space<vmem>>) attributes {dimension_semantics = [#tpu.dimension_semantics<parallel>], iteration_bounds = array<i64: 1>, scalar_prefetch = 0 : i64, scratch_operands = 0 : i64, tpu.core_type = #tpu.core_type<tc>, window_params = [{transform_indices = @transform_0, window_bounds = array<i64: 4, 128>}, {pipeline_mode = #tpu.pipeline_mode<synchronous>, transform_indices = @transform_1, window_bounds = array<i64: 1, 128>}, {pipeline_mode = #tpu.pipeline_mode<synchronous>, transform_indices = @transform_2, window_bounds = array<i64: 1, 128>}, {transform_indices = @transform_3, window_bounds = array<i64: 4, 128>}]} {
    %c0 = arith.constant 0 : index
    %c0_0 = arith.constant 0 : index
    %0 = vector.load %arg2[%c0, %c0_0] : memref<1x128xf32, #tpu.memory_space<vmem>>, vector<1x128xf32>
    %c0_1 = arith.constant 0 : index
    %c0_2 = arith.constant 0 : index
    %1 = vector.load %arg1[%c0_1, %c0_2] : memref<4x128xf32, #tpu.memory_space<vmem>>, vector<4x128xf32>
    %2 = vector.broadcast %0 : vector<1x128xf32> to vector<4x128xf32>
    %3 = arith.mulf %2, %1 : vector<4x128xf32>
    %c0_3 = arith.constant 0 : index
    %c0_4 = arith.constant 0 : index
    %4 = vector.load %arg3[%c0_3, %c0_4] : memref<1x128xf32, #tpu.memory_space<vmem>>, vector<1x128xf32>
    %5 = vector.broadcast %4 : vector<1x128xf32> to vector<4x128xf32>
    %6 = arith.addf %3, %5 : vector<4x128xf32>
    %c0_5 = arith.constant 0 : index
    %c0_6 = arith.constant 0 : index
    %7 = vector.load %arg4[%c0_5, %c0_6] : memref<4x128xf32, #tpu.memory_space<vmem>>, vector<4x128xf32>
    tpu.vector_store %arg4[%c0_5, %c0_6], %6 {strides = array<i32>} : memref<4x128xf32, #tpu.memory_space<vmem>>, vector<4x128xf32>,
    return
  }
  func.func @transform_0(%arg0: i32) -> (i32, i32) {
    %c0_i32 = arith.constant 0 : i32
    %c0_i32_0 = arith.constant 0 : i32
    return %arg0, %c0_i32 : i32, i32
  }
  func.func @transform_1(%arg0: i32) -> (i32, i32) {
    %c0_i32 = arith.constant 0 : i32
    %c0_i32_0 = arith.constant 0 : i32
    %c0_i32_1 = arith.constant 0 : i32
    return %c0_i32, %c0_i32_0 : i32, i32
  }
  func.func @transform_2(%arg0: i32) -> (i32, i32) {
    %c0_i32 = arith.constant 0 : i32
    %c0_i32_0 = arith.constant 0 : i32
    %c0_i32_1 = arith.constant 0 : i32
    return %c0_i32, %c0_i32_0 : i32, i32
  }
  func.func @transform_3(%arg0: i32) -> (i32, i32) {
    %c0_i32 = arith.constant 0 : i32
    %c0_i32_0 = arith.constant 0 : i32
    return %arg0, %c0_i32 : i32, i32
  }
}

</mosaic_0001>

<llo_original>
// kernel: tile.19
$region0: #{tile.19}
  %s0 = inlined_call_operand.vmem [shape: f32[4,32], index: 0, kind: input, shape index: {}]
  %s1 = inlined_call_operand.vmem [shape: f32[1,128], index: 1, kind: output, shape index: {}]
  $region1: #{tile.19} parent=0
    #allocation0 [shape = 'u8[4096]{0}', space=vmem, size = 0x1000, scoped, tag = 'scoped mem for output reshape']
    #allocation1 [shape = 'u8[4096]{0}', space=vmem, size = 0x1000, scoped, tag = 'scoped mem for input reshape']
    %s3 = sshll.u32 1, 4
    %s4 = ssub.s32 %s3, 1
    %v5 = vld [vmem:[%s0] sm:%s4]
    %6 = vst [vmem:[#allocation1] sm:%s4] %v5
    %v7 = vld [vmem:[#allocation1] sm:$0x1]
    %vm8 = vcmask 261120
    %9 = vst.msk [vmem:[#allocation0] sm:$0x1] %vm8, %v7
    %s10 = scalar_lea.vmem [#allocation1], 3
    %v11 = vld [vmem:[%s10] sm:$0x1]
    %12 = vrot.lane.b32.xlu0 %v11, 96
    %v13 = vpop.permute.xlu0 %12
    %vm14 = vcmask 1048320
    %15 = vst.msk [vmem:[#allocation0] sm:$0x1] %vm14, %v13
    %s16 = scalar_lea.vmem [#allocation1], 2
    %v17 = vld [vmem:[%s16] sm:$0x1]
    %18 = vrot.lane.b32.xlu0 %v17, 64
    %v19 = vpop.permute.xlu0 %18
    %vm20 = vcmask 785920
    %21 = vst.msk [vmem:[#allocation0] sm:$0x1] %vm20, %v19
    %s22 = scalar_lea.vmem [#allocation1], 1
    %v23 = vld [vmem:[%s22] sm:$0x1]
    %24 = vrot.lane.b32.xlu0 %v23, 32
    %v25 = vpop.permute.xlu0 %24
    %vm26 = vcmask 523520
    %27 = vst.msk [vmem:[#allocation0] sm:$0x1] %vm26, %v25
    %s29 = sshll.u32 1, 1
    %s30 = ssub.s32 %s29, 1
    %v32 = vld [vmem:[#allocation0] sm:%s30]
    %s33 = sshll.u32 1, 1
    %s34 = ssub.s32 %s33, 1
    %35 = vst [vmem:[%s1] sm:%s34] %v32

// kernel: tile.18
$region0: #{tile.18}
  #allocation0 [shape = 's32[1]{0}', space=sflag, size = 0x4, scoped, tag = 'scoped memory for tile.18']
  %s0 = inlined_call_operand.vmem [shape: f32[32], index: 0, kind: input, shape index: {}]
  %s1 = inlined_call_operand.vmem [shape: f32[4,32], index: 1, kind: output, shape index: {}]
  // Predicated region
  $region2: #{tile.18} parent=0 // pred_check
    _
  $region3: #{tile.18} parent=0 // pred_check_branch
    %3 = sbr.rel (0) target = $region5
  $region4: #{tile.18} parent=0 // pred_region
    _
  $region5: #{tile.18} parent=0 // pred_fallthru
    _
  %v4 = vld [vmem:[%s0] ss:$0 sm:$0xff]
  %5 = vst [vmem:[%s1] sm:$0xf] %v4

// kernel: fwt_forward.1
$region0: #{fwt_forward.1}
  #allocation0 [shape = 'u32[]', space=smem, size = 0x4, offset = 0x4, fixed_abs, tag = 'smem constant byte address 0x4 - core index']
  #allocation1 [shape = 'u32[144,128]{1,0:T(1,128)}', space=vmem, size = 0x12000, scoped, tag = 'internal scratch']
  %s0 = inlined_call_operand.vmem [shape: f32[4,128], index: 0, kind: input, shape index: {}]
  %s1 = inlined_call_operand.vmem [shape: f32[1,128], index: 1, kind: input, shape index: {}]
  %s2 = inlined_call_operand.vmem [shape: f32[1,128], index: 2, kind: input, shape index: {}]
  %s3 = inlined_call_operand.vmem [shape: f32[4,128], index: 3, kind: output, shape index: {}]
  %s4 = sld [smem:[#allocation0]]
  $region22: #{fwt_forward.1} parent=0
    _
  %s6 = ssub.s32 1, %s4
  %s7 = scalar_select 0, %s6, %s4
  // Predicated region
  $region2: #{fwt_forward.1} parent=0 // pred_check
    _
  $region3: #{fwt_forward.1} parent=0 // pred_check_branch
    %9 = sbr.rel (0) target = $region5
  $region4: #{fwt_forward.1} parent=0 // pred_region
    _
  $region5: #{fwt_forward.1} parent=0 // pred_fallthru
    _
  // Predicated region
  $region6: #{fwt_forward.1} parent=0 // pred_check
    _
  $region7: #{fwt_forward.1} parent=0 // pred_check_branch
    %11 = sbr.rel (0) target = $region9
  $region8: #{fwt_forward.1} parent=0 // pred_region
    _
  $region9: #{fwt_forward.1} parent=0 // pred_fallthru
    _
  // Predicated region
  $region10: #{fwt_forward.1} parent=0 // pred_check
    _
  $region11: #{fwt_forward.1} parent=0 // pred_check_branch
    %13 = sbr.rel (0) target = $region13
  $region12: #{fwt_forward.1} parent=0 // pred_region
    _
  $region13: #{fwt_forward.1} parent=0 // pred_fallthru
    _
  %v14 = vld [vmem:[%s1] sm:$0x1]
  %v15 = vld [vmem:[%s0] sm:$0xf]
  %v17 = vlaneseq
  %v18 = vshrl.u32 %v17, 7
  %v19 = vsub.s32 0, %v18
  %v20 = vrot.slane %v14, %v19
  %v22 = vmul.f32 %v20, %v15
  %v23 = vld [vmem:[%s2] sm:$0x1]
  %v25 = vlaneseq
  %v26 = vshrl.u32 %v25, 7
  %v27 = vsub.s32 0, %v26
  %v28 = vrot.slane %v23, %v27
  %v30 = vadd.f32 %v22, %v28
  %31 = vst [vmem:[%s3] sm:$0xf] %v30
  // Predicated region
  $region14: #{fwt_forward.1} parent=0 // pred_check
    _
  $region15: #{fwt_forward.1} parent=0 // pred_check_branch
    %33 = sbr.rel (0) target = $region17
  $region16: #{fwt_forward.1} parent=0 // pred_region
    _
  $region17: #{fwt_forward.1} parent=0 // pred_fallthru
    _
  // Predicated region
  $region18: #{fwt_forward.1} parent=0 // pred_check
    _
  $region19: #{fwt_forward.1} parent=0 // pred_check_branch
    %35 = sbr.rel (0) target = $region21
  $region20: #{fwt_forward.1} parent=0 // pred_region
    _
  $region21: #{fwt_forward.1} parent=0 // pred_fallthru
    _

</llo_original>
